<compile_context>
chip_gen: v5e
topology: v5e:2x2
jax: 0.10.0
libtpu: 0.0.40
codegen_flags: <defaults>
</compile_context>

<pallas_src>
import math
import functools

import jax
import jax.numpy as jnp
from jax import lax
from jax.experimental import pallas as pl
from jax.experimental.pallas import tpu as pltpu


def _attention_kernel(x1_ref, x2_ref, wq_ref, wkv_ref, wo_ref, u_ref, out_ref,
                      *, B, S, T, D, Do, scale, dropout_p):
    # Whole-batch projections: one MXU pass each instead of 3*B tiny matmuls.
    q_all = jnp.dot(x1_ref[...], wq_ref[...],
                    preferred_element_type=jnp.float32)          # (B*S, D)
    kv_all = jnp.dot(x2_ref[...], wkv_ref[...],
                     preferred_element_type=jnp.float32)         # (B*T, 2D)
    u_all = u_ref[...]                                           # (B*S, T)
    wo_t = wo_ref[...]                                           # (S, Do)

    inv_keep = 1.0 / (1.0 - dropout_p) if dropout_p > 0.0 else 1.0

    # Short fully-unrolled loop over the (static, tiny) batch.
    for b in range(B):
        q = q_all[b * S:(b + 1) * S, :]                          # (S, D)
        kv = kv_all[b * T:(b + 1) * T, :]                        # (T, 2D)
        k = kv[:, :D]                                            # (T, D)
        v = kv[:, D:]                                            # (T, D)

        # scores = q @ k^T  (contraction expressed directly, no materialized .T)
        scores = lax.dot_general(q, k, (((1,), (1,)), ((), ())),
                                 preferred_element_type=jnp.float32) * scale  # (S, T)

        # softmax over key axis
        m = jnp.max(scores, axis=-1, keepdims=True)
        e = jnp.exp(scores - m)
        attn = e / jnp.sum(e, axis=-1, keepdims=True)

        # training-mode F.dropout: zero w.p. p, scale survivors by 1/(1-p).
        # Uniform randoms are precomputed in the wrapper (no in-kernel PRNG).
        if dropout_p > 0.0:
            keep = u_all[b * S:(b + 1) * S, :] >= dropout_p
            attn = jnp.where(keep, attn * inv_keep, jnp.zeros_like(attn))

        out = jnp.dot(attn, v, preferred_element_type=jnp.float32)  # (S, D)

        # output.view(B, H*S, D).transpose(1, 2) @ wo^T  ==  out^T @ wo^T
        # expressed as a contraction over axis 0 of both operands.
        final = lax.dot_general(out, wo_t, (((0,), (0,)), ((), ())),
                                preferred_element_type=jnp.float32)  # (D, Do)

        out_ref[b] = final.astype(out_ref.dtype)


def model_forward(x1, x2, wq, wk, wv, wo, *, num_heads=1, dropout_p=0.2,
                  rng_key=None):
    B, S, D = x1.shape
    Bk, T, Dk = x2.shape
    assert B == Bk and D == Dk
    # TODO(synk): num_heads > 1 chunks the sequence axis and wo mixes across
    # heads; only the module's instantiated config (num_heads=1) is implemented.
    assert num_heads == 1
    Do, Din = wo.shape
    assert Din == num_heads * S == D, "module requires num_heads * seq_len == dim"
    scale = math.sqrt(Do / num_heads)       # matches the module's scale_factor

    # Flatten the batch into the row axis so the projections are single matmuls.
    x1f = x1.reshape(B * S, D)
    x2f = x2.reshape(B * T, D)
    wq_t = wq.T                                        # (D, D)
    wkv_t = jnp.concatenate([wk.T, wv.T], axis=1)      # (D, 2D) fused k/v weights
    wo_t = wo.T                                        # (H*S == D, Do)

    if dropout_p > 0.0:
        if rng_key is None:
            rng_key = jax.random.PRNGKey(0)
        u = jax.random.uniform(rng_key, (B * S, T), dtype=jnp.float32)
    else:
        u = jnp.ones((B * S, T), dtype=jnp.float32)    # never dropped (unused)

    kernel = functools.partial(_attention_kernel, B=B, S=S, T=T, D=D, Do=Do,
                               scale=scale, dropout_p=dropout_p)

    vmem = pl.BlockSpec(memory_space=pltpu.MemorySpace.VMEM)
    return pl.pallas_call(
        kernel,
        out_shape=jax.ShapeDtypeStruct((B, D, Do), x1.dtype),
        in_specs=[vmem] * 6,
        out_specs=vmem,
    )(x1f, x2f, wq_t, wkv_t, wo_t, u)


def _reference_no_dropout(x1, x2, wq, wk, wv, wo, num_heads):
    # pure-JAX replica of the torch forward with dropout disabled
    q = x1 @ wq.T
    k = x2 @ wk.T
    v = x2 @ wv.T
    scale = math.sqrt(wo.shape[0] / num_heads)
    scores = jnp.einsum("bsd,btd->bst", q, k) * scale
    attn = jax.nn.softmax(scores, axis=-1)
    out = jnp.einsum("bst,btd->bsd", attn, v)
    out_t = jnp.transpose(out, (0, 2, 1))              # (B, D, H*S)
    return out_t @ wo.T                                # (B, D, Do)


if __name__ == "__main__":
    # Small consistent shapes implied by the forward: num_heads * S must equal dim.
    B, S, T, D, Do, H = 2, 16, 8, 16, 8, 1
    key = jax.random.PRNGKey(0)
    k1, k2, k3, k4, k5, k6, k7 = jax.random.split(key, 7)
    x1 = jax.random.normal(k1, (B, S, D), jnp.float32)
    x2 = jax.random.normal(k2, (B, T, D), jnp.float32)
    wq = jax.random.normal(k3, (D, D), jnp.float32) / math.sqrt(D)
    wk = jax.random.normal(k4, (D, D), jnp.float32) / math.sqrt(D)
    wv = jax.random.normal(k5, (D, D), jnp.float32) / math.sqrt(D)
    wo = jax.random.normal(k6, (Do, D), jnp.float32) / math.sqrt(D)

    # Correctness check with dropout disabled (deterministic path).
    out_nodrop = jax.block_until_ready(
        model_forward(x1, x2, wq, wk, wv, wo, num_heads=H, dropout_p=0.0))
    ref = _reference_no_dropout(x1, x2, wq, wk, wv, wo, H)
    assert out_nodrop.shape == (B, D, Do)
    assert float(jnp.max(jnp.abs(out_nodrop - ref))) < 1e-4

    # Run the module's configured dropout_p = 0.2 (training-mode dropout).
    out = jax.block_until_ready(
        model_forward(x1, x2, wq, wk, wv, wo, num_heads=H, dropout_p=0.2,
                      rng_key=k7))
    assert out.shape == (B, D, Do)
    assert bool(jnp.all(jnp.isfinite(out)))
    print("KERNEL_OK")
</pallas_src>

<mosaic_0001>
module attributes {stable_mosaic.version = 11 : i64} {
  func.func @_attention_kernel(%arg0: memref<32x16xf32, #tpu.memory_space<vmem>>, %arg1: memref<16x16xf32, #tpu.memory_space<vmem>>, %arg2: memref<16x16xf32, #tpu.memory_space<vmem>>, %arg3: memref<16x32xf32, #tpu.memory_space<vmem>>, %arg4: memref<16x8xf32, #tpu.memory_space<vmem>>, %arg5: memref<32x8xf32, #tpu.memory_space<vmem>>, %arg6: memref<2x16x8xf32, #tpu.memory_space<vmem>>) attributes {dimension_semantics = [], scalar_prefetch = 0 : i64, scratch_operands = 0 : i64, tpu.core_type = #tpu.core_type<tc>} {
    %c0 = arith.constant 0 : index
    %c0_0 = arith.constant 0 : index
    %0 = vector.load %arg0[%c0, %c0_0] : memref<32x16xf32, #tpu.memory_space<vmem>>, vector<32x16xf32>
    %c0_1 = arith.constant 0 : index
    %c0_2 = arith.constant 0 : index
    %1 = vector.load %arg2[%c0_1, %c0_2] : memref<16x16xf32, #tpu.memory_space<vmem>>, vector<16x16xf32>
    %cst = arith.constant dense<0.000000e+00> : vector<32x16xf32>
    %2 = tpu.matmul %0, %1, %cst {dimension_numbers = #tpu.dot_dimension_numbers<[1], [0], [0], [1], [0, 0, 1, 1], [], []>} : vector<32x16xf32>, vector<16x16xf32>, vector<32x16xf32> -> vector<32x16xf32>
    %c0_3 = arith.constant 0 : index
    %c0_4 = arith.constant 0 : index
    %3 = vector.load %arg1[%c0_3, %c0_4] : memref<16x16xf32, #tpu.memory_space<vmem>>, vector<16x16xf32>
    %c0_5 = arith.constant 0 : index
    %c0_6 = arith.constant 0 : index
    %4 = vector.load %arg3[%c0_5, %c0_6] : memref<16x32xf32, #tpu.memory_space<vmem>>, vector<16x32xf32>
    %cst_7 = arith.constant dense<0.000000e+00> : vector<16x32xf32>
    %5 = tpu.matmul %3, %4, %cst_7 {dimension_numbers = #tpu.dot_dimension_numbers<[1], [0], [0], [1], [0, 0, 1, 1], [], []>} : vector<16x16xf32>, vector<16x32xf32>, vector<16x32xf32> -> vector<16x32xf32>
    %c0_8 = arith.constant 0 : index
    %c0_9 = arith.constant 0 : index
    %6 = vector.load %arg4[%c0_8, %c0_9] : memref<16x8xf32, #tpu.memory_space<vmem>>, vector<16x8xf32>
    %7 = vector.extract_strided_slice %2 {offsets = [0, 0], sizes = [16, 16], strides = [1, 1]} : vector<32x16xf32> to vector<16x16xf32>
    %8 = vector.extract_strided_slice %5 {offsets = [0, 0], sizes = [8, 32], strides = [1, 1]} : vector<16x32xf32> to vector<8x32xf32>
    %9 = vector.extract_strided_slice %8 {offsets = [0, 0], sizes = [8, 16], strides = [1, 1]} : vector<8x32xf32> to vector<8x16xf32>
    %10 = vector.extract_strided_slice %8 {offsets = [0, 16], sizes = [8, 16], strides = [1, 1]} : vector<8x32xf32> to vector<8x16xf32>
    %cst_10 = arith.constant dense<0.000000e+00> : vector<16x8xf32>
    %11 = tpu.matmul %7, %9, %cst_10 {dimension_numbers = #tpu.dot_dimension_numbers<[1], [1], [0], [0], [0, 0, 1, 0], [], []>} : vector<16x16xf32>, vector<8x16xf32>, vector<16x8xf32> -> vector<16x8xf32>
    %cst_11 = arith.constant 2.82842708 : f32
    %12 = vector.broadcast %cst_11 : f32 to vector<16x8xf32>
    %13 = arith.mulf %11, %12 : vector<16x8xf32>
    %cst_12 = arith.constant dense<0xFF800000> : vector<16xf32>
    %14 = vector.multi_reduction <maximumf>, %13, %cst_12 [1] : vector<16x8xf32> to vector<16xf32>
    %15 = vector.shape_cast %14 : vector<16xf32> to vector<16x1xf32>
    %16 = vector.broadcast %15 : vector<16x1xf32> to vector<16x8xf32>
    %17 = arith.subf %13, %16 : vector<16x8xf32>
    %18 = math.exp %17 : vector<16x8xf32>
    %cst_13 = arith.constant dense<0.000000e+00> : vector<16xf32>
    %19 = vector.multi_reduction <add>, %18, %cst_13 [1] : vector<16x8xf32> to vector<16xf32>
    %20 = vector.shape_cast %19 : vector<16xf32> to vector<16x1xf32>
    %21 = vector.broadcast %20 : vector<16x1xf32> to vector<16x8xf32>
    %22 = arith.divf %18, %21 : vector<16x8xf32>
    %cst_14 = arith.constant dense<0.000000e+00> : vector<16x16xf32>
    %23 = tpu.matmul %22, %10, %cst_14 {dimension_numbers = #tpu.dot_dimension_numbers<[1], [0], [0], [1], [0, 0, 1, 1], [], []>} : vector<16x8xf32>, vector<8x16xf32>, vector<16x16xf32> -> vector<16x16xf32>
    %cst_15 = arith.constant dense<0.000000e+00> : vector<16x8xf32>
    %24 = tpu.matmul %23, %6, %cst_15 {dimension_numbers = #tpu.dot_dimension_numbers<[0], [0], [1], [1], [0, 1, 1, 1], [], []>} : vector<16x16xf32>, vector<16x8xf32>, vector<16x8xf32> -> vector<16x8xf32>
    %c0_16 = arith.constant 0 : index
    %c0_17 = arith.constant 0 : index
    %c0_18 = arith.constant 0 : index
    %25 = vector.load %arg6[%c0_16, %c0_17, %c0_18] : memref<2x16x8xf32, #tpu.memory_space<vmem>>, vector<1x16x8xf32>
    %26 = vector.shape_cast %25 : vector<1x16x8xf32> to vector<16x8xf32>
    %27 = vector.shape_cast %24 : vector<16x8xf32> to vector<1x16x8xf32>
    tpu.vector_store %arg6[%c0_16, %c0_17, %c0_18], %27 {strides = array<i32>} : memref<2x16x8xf32, #tpu.memory_space<vmem>>, vector<1x16x8xf32>,
    %28 = vector.extract_strided_slice %2 {offsets = [16, 0], sizes = [16, 16], strides = [1, 1]} : vector<32x16xf32> to vector<16x16xf32>
    %29 = vector.extract_strided_slice %5 {offsets = [8, 0], sizes = [8, 32], strides = [1, 1]} : vector<16x32xf32> to vector<8x32xf32>
    %30 = vector.extract_strided_slice %29 {offsets = [0, 0], sizes = [8, 16], strides = [1, 1]} : vector<8x32xf32> to vector<8x16xf32>
    %31 = vector.extract_strided_slice %29 {offsets = [0, 16], sizes = [8, 16], strides = [1, 1]} : vector<8x32xf32> to vector<8x16xf32>
    %cst_19 = arith.constant dense<0.000000e+00> : vector<16x8xf32>
    %32 = tpu.matmul %28, %30, %cst_19 {dimension_numbers = #tpu.dot_dimension_numbers<[1], [1], [0], [0], [0, 0, 1, 0], [], []>} : vector<16x16xf32>, vector<8x16xf32>, vector<16x8xf32> -> vector<16x8xf32>
    %cst_20 = arith.constant 2.82842708 : f32
    %33 = vector.broadcast %cst_20 : f32 to vector<16x8xf32>
    %34 = arith.mulf %32, %33 : vector<16x8xf32>
    %cst_21 = arith.constant dense<0xFF800000> : vector<16xf32>
    %35 = vector.multi_reduction <maximumf>, %34, %cst_21 [1] : vector<16x8xf32> to vector<16xf32>
    %36 = vector.shape_cast %35 : vector<16xf32> to vector<16x1xf32>
    %37 = vector.broadcast %36 : vector<16x1xf32> to vector<16x8xf32>
    %38 = arith.subf %34, %37 : vector<16x8xf32>
    %39 = math.exp %38 : vector<16x8xf32>
    %cst_22 = arith.constant dense<0.000000e+00> : vector<16xf32>
    %40 = vector.multi_reduction <add>, %39, %cst_22 [1] : vector<16x8xf32> to vector<16xf32>
    %41 = vector.shape_cast %40 : vector<16xf32> to vector<16x1xf32>
    %42 = vector.broadcast %41 : vector<16x1xf32> to vector<16x8xf32>
    %43 = arith.divf %39, %42 : vector<16x8xf32>
    %cst_23 = arith.constant dense<0.000000e+00> : vector<16x16xf32>
    %44 = tpu.matmul %43, %31, %cst_23 {dimension_numbers = #tpu.dot_dimension_numbers<[1], [0], [0], [1], [0, 0, 1, 1], [], []>} : vector<16x8xf32>, vector<8x16xf32>, vector<16x16xf32> -> vector<16x16xf32>
    %cst_24 = arith.constant dense<0.000000e+00> : vector<16x8xf32>
    %45 = tpu.matmul %44, %6, %cst_24 {dimension_numbers = #tpu.dot_dimension_numbers<[0], [0], [1], [1], [0, 1, 1, 1], [], []>} : vector<16x16xf32>, vector<16x8xf32>, vector<16x8xf32> -> vector<16x8xf32>
    %c1 = arith.constant 1 : index
    %c0_25 = arith.constant 0 : index
    %c0_26 = arith.constant 0 : index
    %46 = vector.load %arg6[%c1, %c0_25, %c0_26] : memref<2x16x8xf32, #tpu.memory_space<vmem>>, vector<1x16x8xf32>
    %47 = vector.shape_cast %46 : vector<1x16x8xf32> to vector<16x8xf32>
    %48 = vector.shape_cast %45 : vector<16x8xf32> to vector<1x16x8xf32>
    tpu.vector_store %arg6[%c1, %c0_25, %c0_26], %48 {strides = array<i32>} : memref<2x16x8xf32, #tpu.memory_space<vmem>>, vector<1x16x8xf32>,
    return
  }
}

</mosaic_0001>

<llo_original>
// kernel: tpu_custom_call.1
$region0: #{tpu_custom_call.1}
  #allocation0 [shape = 'u32[]', space=smem, size = 0x4, offset = 0x4, fixed_abs, tag = 'smem constant byte address 0x4 - core index']
  #allocation1 [shape = 'u32[72,128]{1,0:T(1,128)}', space=vmem, size = 0x9000, scoped, tag = 'internal scratch']
  %s0 = inlined_call_operand.vmem [shape: f32[32,16], index: 0, kind: input, shape index: {}]
  %s1 = inlined_call_operand.vmem [shape: f32[16,16], index: 1, kind: input, shape index: {}]
  %s2 = inlined_call_operand.vmem [shape: f32[16,16], index: 2, kind: input, shape index: {}]
  %s3 = inlined_call_operand.vmem [shape: f32[16,32], index: 3, kind: input, shape index: {}]
  %s4 = inlined_call_operand.vmem [shape: f32[16,8], index: 4, kind: input, shape index: {}]
  %s5 = inlined_call_operand.vmem [shape: f32[32,8], index: 5, kind: input, shape index: {}]
  %s6 = inlined_call_operand.vmem [shape: f32[2,16,8], index: 6, kind: output, shape index: {}]
  %s7 = sld [smem:[#allocation0]]
  $region34: #{tpu_custom_call.1} parent=0
    _
  %s9 = ssub.s32 1, %s7
  %s10 = scalar_select 0, %s9, %s7
  // Predicated region
  $region2: #{tpu_custom_call.1} parent=0 // pred_check
    _
  $region3: #{tpu_custom_call.1} parent=0 // pred_check_branch
    %12 = sbr.rel (0) target = $region5
  $region4: #{tpu_custom_call.1} parent=0 // pred_region
    _
  $region5: #{tpu_custom_call.1} parent=0 // pred_fallthru
    _
  // Predicated region
  $region6: #{tpu_custom_call.1} parent=0 // pred_check
    _
  $region7: #{tpu_custom_call.1} parent=0 // pred_check_branch
    %14 = sbr.rel (0) target = $region9
  $region8: #{tpu_custom_call.1} parent=0 // pred_region
    _
  $region9: #{tpu_custom_call.1} parent=0 // pred_fallthru
    _
  // Predicated region
  $region10: #{tpu_custom_call.1} parent=0 // pred_check
    _
  $region11: #{tpu_custom_call.1} parent=0 // pred_check_branch
    %16 = sbr.rel (0) target = $region13
  $region12: #{tpu_custom_call.1} parent=0 // pred_region
    _
  $region13: #{tpu_custom_call.1} parent=0 // pred_fallthru
    _
  // Predicated region
  $region14: #{tpu_custom_call.1} parent=0 // pred_check
    _
  $region15: #{tpu_custom_call.1} parent=0 // pred_check_branch
    %18 = sbr.rel (0) target = $region17
  $region16: #{tpu_custom_call.1} parent=0 // pred_region
    _
  $region17: #{tpu_custom_call.1} parent=0 // pred_fallthru
    _
  // Predicated region
  $region18: #{tpu_custom_call.1} parent=0 // pred_check
    _
  $region19: #{tpu_custom_call.1} parent=0 // pred_check_branch
    %20 = sbr.rel (0) target = $region21
  $region20: #{tpu_custom_call.1} parent=0 // pred_region
    _
  $region21: #{tpu_custom_call.1} parent=0 // pred_fallthru
    _
  // Predicated region
  $region22: #{tpu_custom_call.1} parent=0 // pred_check
    _
  $region23: #{tpu_custom_call.1} parent=0 // pred_check_branch
    %22 = sbr.rel (0) target = $region25
  $region24: #{tpu_custom_call.1} parent=0 // pred_region
    _
  $region25: #{tpu_custom_call.1} parent=0 // pred_fallthru
    _
  %v23 = vld [vmem:[%s0] sm:$0xff]
  %v24 = vld [vmem:[%s0 + $0x8] sm:$0xff]
  %v25 = vld [vmem:[%s0 + $0x10] sm:$0xff]
  %v26 = vld [vmem:[%s0 + $0x18] sm:$0xff]
  %v27 = vld [vmem:[%s2] sm:$0xff]
  %v28 = vld [vmem:[%s2 + $0x8] sm:$0xff]
  %vm29 = vcmask 130048
  %v31 = vsel %vm29, %v23, 0
  %v34 = vsel %vm29, %v24, 0
  %v37 = vsel %vm29, %v25, 0
  %v40 = vsel %vm29, %v26, 0
  %42 = vmatpush.msra.mxu0 0.0
  %43 = vmatpush.msra.mxu0 0.0
  %44 = vmatpush.msra.mxu0 0.0
  %45 = vmatpush.msra.mxu0 0.0
  %46 = vmatpush.msra.mxu0 0.0
  %47 = vmatpush.msra.mxu0 0.0
  %48 = vmatpush.msra.mxu0 0.0
  %49 = vmatpush.msra.mxu0 0.0
  %50 = vmatpush.msra.mxu0 0.0
  %51 = vmatpush.msra.mxu0 0.0
  %52 = vmatpush.msra.mxu0 0.0
  %53 = vmatpush.msra.mxu0 0.0
  %54 = vmatpush.msra.mxu0 0.0
  %55 = vmatpush.msra.mxu0 0.0
  %56 = vmatpush.msra.mxu0 %v28
  %57 = vmatpush.msra.mxu0 %v27
  %58 = vmatmul.f32.gmra.mxu0 %v31
  %v59 = vpop.f32.mrf.mxu0
  %v60 = vadd.f32 0.0, %v59
  %61 = vmatmul.f32.gmra.mxu0 %v34
  %v62 = vpop.f32.mrf.mxu0
  %v63 = vadd.f32 0.0, %v62
  %64 = vmatmul.f32.gmra.mxu0 %v37
  %v65 = vpop.f32.mrf.mxu0
  %v66 = vadd.f32 0.0, %v65
  %67 = vmatmul.f32.gmra.mxu0 %v40
  %v68 = vpop.f32.mrf.mxu0
  %v69 = vadd.f32 0.0, %v68
  %70 = vdwg.mxu0
  %v71 = vld [vmem:[%s1] sm:$0xff]
  %v72 = vld [vmem:[%s1 + $0x8] sm:$0xff]
  %v73 = vld [vmem:[%s3] sm:$0xff]
  %v74 = vld [vmem:[%s3 + $0x8] sm:$0xff]
  %v76 = vsel %vm29, %v71, 0
  %v79 = vsel %vm29, %v72, 0
  %81 = vmatpush.msra.mxu0 0.0
  %82 = vmatpush.msra.mxu0 0.0
  %83 = vmatpush.msra.mxu0 0.0
  %84 = vmatpush.msra.mxu0 0.0
  %85 = vmatpush.msra.mxu0 0.0
  %86 = vmatpush.msra.mxu0 0.0
  %87 = vmatpush.msra.mxu0 0.0
  %88 = vmatpush.msra.mxu0 0.0
  %89 = vmatpush.msra.mxu0 0.0
  %90 = vmatpush.msra.mxu0 0.0
  %91 = vmatpush.msra.mxu0 0.0
  %92 = vmatpush.msra.mxu0 0.0
  %93 = vmatpush.msra.mxu0 0.0
  %94 = vmatpush.msra.mxu0 0.0
  %95 = vmatpush.msra.mxu0 %v74
  %96 = vmatpush.msra.mxu0 %v73
  %97 = vmatmul.f32.gmra.mxu0 %v76
  %v98 = vpop.f32.mrf.mxu0
  %v99 = vadd.f32 0.0, %v98
  %100 = vmatmul.f32.gmra.mxu0 %v79
  %v101 = vpop.f32.mrf.mxu0
  %v102 = vadd.f32 0.0, %v101
  %103 = vdwg.mxu0
  %v104 = vld [vmem:[%s4] sm:$0xff]
  %v105 = vld [vmem:[%s4 + $0x8] sm:$0xff]
  %v107 = vsel %vm29, %v60, 0
  %v110 = vsel %vm29, %v63, 0
  %v113 = vsel %vm29, %v99, 0
  %115 = vmatpush.xpose.msra.mxu0 0.0
  %116 = vmatpush.xpose.msra.mxu0 0.0
  %117 = vmatpush.xpose.msra.mxu0 0.0
  %118 = vmatpush.xpose.msra.mxu0 0.0
  %119 = vmatpush.xpose.msra.mxu0 0.0
  %120 = vmatpush.xpose.msra.mxu0 0.0
  %121 = vmatpush.xpose.msra.mxu0 0.0
  %122 = vmatpush.xpose.msra.mxu0 0.0
  %123 = vmatpush.xpose.msra.mxu0 0.0
  %124 = vmatpush.xpose.msra.mxu0 0.0
  %125 = vmatpush.xpose.msra.mxu0 0.0
  %126 = vmatpush.xpose.msra.mxu0 0.0
  %127 = vmatpush.xpose.msra.mxu0 0.0
  %128 = vmatpush.xpose.msra.mxu0 0.0
  %129 = vmatpush.xpose.msra.mxu0 0.0
  %130 = vmatpush.xpose.msra.mxu0 %v113
  %131 = vmatmul.f32.gmra.mxu0 %v107
  %v132 = vpop.f32.mrf.mxu0
  %v133 = vadd.f32 0.0, %v132
  %134 = vmatmul.f32.gmra.mxu0 %v110
  %v135 = vpop.f32.mrf.mxu0
  %v136 = vadd.f32 0.0, %v135
  %137 = vdwg.mxu0
  %v138 = vmul.f32 %v133, 2.828427
  %v139 = vmul.f32 %v136, 2.828427
  %vm140 = vcmask 64512
  %v141 = vsel %vm140, %v138, -inf
  %142 = vmax.xlane.f32.xlu0 %v141
  %v143 = vpop.xlane.xlu0 %142
  %v144 = vsel %vm140, %v139, -inf
  %145 = vmax.xlane.f32.xlu0 %v144
  %v146 = vpop.xlane.xlu0 %145
  %v147 = vsub.f32 %v138, %v143
  %v148 = vsub.f32 %v139, %v146
  %v149 = vmul.f32 %v147, 1.442695
  %v150 = vpow.pop %v149
  %v151 = vmul.f32 %v148, 1.442695
  %v152 = vpow.pop %v151
  %v153 = vsel %vm140, %v150, 0.0
  %154 = vadd.xlane.f32.xlu0 %v153
  %v155 = vpop.xlane.xlu0 %154
  %v156 = vsel %vm140, %v152, 0.0
  %157 = vadd.xlane.f32.xlu0 %v156
  %v158 = vpop.xlane.xlu0 %157
  %v159 = vrcp.pop %v155
  %v160 = vmul.f32 %v155, %v159
  %v161 = vsub.f32 1.0, %v160
  %v162 = vmul.f32 %v159, %v161
  %v163 = vadd.f32 %v159, %v162
  %vm164 = vweird.f32 %v155
  %vm165 = vweird.f32 %v159
  %vm166 = vmor %vm164, %vm165
  %v167 = vsel %vm166, %v159, %v163
  %v168 = vand.u32 2147483647, %v155
  %vm169 = vcmp.eq.f32.partialorder %v168, 8.507059e+37
  %v170 = vand.u32 %v155, 2147483648
  %v171 = vor.u32 1.1754944e-38, %v170
  %v172 = vsel %vm169, %v171, %v167
  %v173 = vmul.f32 %v150, %v172
  %v174 = vrcp.pop %v158
  %v175 = vmul.f32 %v158, %v174
  %v176 = vsub.f32 1.0, %v175
  %v177 = vmul.f32 %v174, %v176
  %v178 = vadd.f32 %v174, %v177
  %vm179 = vweird.f32 %v158
  %vm180 = vweird.f32 %v174
  %vm181 = vmor %vm179, %vm180
  %v182 = vsel %vm181, %v174, %v178
  %v183 = vand.u32 2147483647, %v158
  %vm184 = vcmp.eq.f32.partialorder %v183, 8.507059e+37
  %v185 = vand.u32 %v158, 2147483648
  %v186 = vor.u32 1.1754944e-38, %v185
  %v187 = vsel %vm184, %v186, %v182
  %v188 = vmul.f32 %v152, %v187
  %189 = vrot.lane.b32.xlu0 %v99, 112
  %v190 = vpop.permute.xlu0 %189
  %v193 = vsel %vm140, %v173, 0
  %v196 = vsel %vm140, %v188, 0
  %198 = vmatpush.msra.mxu0 0.0
  %199 = vmatpush.msra.mxu0 0.0
  %200 = vmatpush.msra.mxu0 0.0
  %201 = vmatpush.msra.mxu0 0.0
  %202 = vmatpush.msra.mxu0 0.0
  %203 = vmatpush.msra.mxu0 0.0
  %204 = vmatpush.msra.mxu0 0.0
  %205 = vmatpush.msra.mxu0 0.0
  %206 = vmatpush.msra.mxu0 0.0
  %207 = vmatpush.msra.mxu0 0.0
  %208 = vmatpush.msra.mxu0 0.0
  %209 = vmatpush.msra.mxu0 0.0
  %210 = vmatpush.msra.mxu0 0.0
  %211 = vmatpush.msra.mxu0 0.0
  %212 = vmatpush.msra.mxu0 0.0
  %213 = vmatpush.msra.mxu0 %v190
  %214 = vmatmul.f32.gmra.mxu0 %v193
  %v215 = vpop.f32.mrf.mxu0
  %v216 = vadd.f32 0.0, %v215
  %217 = vmatmul.f32.gmra.mxu0 %v196
  %v218 = vpop.f32.mrf.mxu0
  %v219 = vadd.f32 0.0, %v218
  %220 = vdwg.mxu0
  %221 = vxpose.xlu0.b32.start [1/16] %v216, 128
  %222 = vxpose.xlu0.b32.cont [2/16] %v219, 128
  %223 = vxpose.xlu0.b32.cont [3/16] 0.0, 128
  %224 = vxpose.xlu0.b32.cont [4/16] 0.0, 128
  %225 = vxpose.xlu0.b32.cont [5/16] 0.0, 128
  %226 = vxpose.xlu0.b32.cont [6/16] 0.0, 128
  %227 = vxpose.xlu0.b32.cont [7/16] 0.0, 128
  %228 = vxpose.xlu0.b32.cont [8/16] 0.0, 128
  %229 = vxpose.xlu0.b32.cont [9/16] 0.0, 128
  %230 = vxpose.xlu0.b32.cont [10/16] 0.0, 128
  %231 = vxpose.xlu0.b32.cont [11/16] 0.0, 128
  %232 = vxpose.xlu0.b32.cont [12/16] 0.0, 128
  %233 = vxpose.xlu0.b32.cont [13/16] 0.0, 128
  %234 = vxpose.xlu0.b32.cont [14/16] 0.0, 128
  %235 = vxpose.xlu0.b32.cont [15/16] 0.0, 128
  %236 = vxpose.xlu0.b32.end [16/16] 0.0, 128
  %v237 = vpop.trf.xlu0
  %v238 = vpop.trf.xlu0
  %v239 = vpop.trf.xlu0
  %v240 = vpop.trf.xlu0
  %v241 = vpop.trf.xlu0
  %v242 = vpop.trf.xlu0
  %v243 = vpop.trf.xlu0
  %v244 = vpop.trf.xlu0
  %v245 = vpop.trf.xlu0
  %v246 = vpop.trf.xlu0
  %v247 = vpop.trf.xlu0
  %v248 = vpop.trf.xlu0
  %v249 = vpop.trf.xlu0
  %v250 = vpop.trf.xlu0
  %v251 = vpop.trf.xlu0
  %v252 = vpop.trf.xlu0
  %v254 = vsel %vm29, %v237, 0
  %v257 = vsel %vm29, %v238, 0
  %259 = vmatpush.msra.mxu0 0.0
  %260 = vmatpush.msra.mxu0 0.0
  %261 = vmatpush.msra.mxu0 0.0
  %262 = vmatpush.msra.mxu0 0.0
  %263 = vmatpush.msra.mxu0 0.0
  %264 = vmatpush.msra.mxu0 0.0
  %265 = vmatpush.msra.mxu0 0.0
  %266 = vmatpush.msra.mxu0 0.0
  %267 = vmatpush.msra.mxu0 0.0
  %268 = vmatpush.msra.mxu0 0.0
  %269 = vmatpush.msra.mxu0 0.0
  %270 = vmatpush.msra.mxu0 0.0
  %271 = vmatpush.msra.mxu0 0.0
  %272 = vmatpush.msra.mxu0 0.0
  %273 = vmatpush.msra.mxu0 %v105
  %274 = vmatpush.msra.mxu0 %v104
  %275 = vmatmul.f32.gmra.mxu0 %v254
  %v276 = vpop.f32.mrf.mxu0
  %v277 = vadd.f32 0.0, %v276
  %278 = vmatmul.f32.gmra.mxu0 %v257
  %v279 = vpop.f32.mrf.mxu0
  %v280 = vadd.f32 0.0, %v279
  %281 = vdwg.mxu0
  %282 = vst.msk [vmem:[%s6] sm:$0xff] %vm140, %v277
  %283 = vst.msk [vmem:[%s6 + $0x8] sm:$0xff] %vm140, %v280
  %v285 = vsel %vm29, %v66, 0
  %v288 = vsel %vm29, %v69, 0
  %v291 = vsel %vm29, %v102, 0
  %293 = vmatpush.xpose.msra.mxu0 0.0
  %294 = vmatpush.xpose.msra.mxu0 0.0
  %295 = vmatpush.xpose.msra.mxu0 0.0
  %296 = vmatpush.xpose.msra.mxu0 0.0
  %297 = vmatpush.xpose.msra.mxu0 0.0
  %298 = vmatpush.xpose.msra.mxu0 0.0
  %299 = vmatpush.xpose.msra.mxu0 0.0
  %300 = vmatpush.xpose.msra.mxu0 0.0
  %301 = vmatpush.xpose.msra.mxu0 0.0
  %302 = vmatpush.xpose.msra.mxu0 0.0
  %303 = vmatpush.xpose.msra.mxu0 0.0
  %304 = vmatpush.xpose.msra.mxu0 0.0
  %305 = vmatpush.xpose.msra.mxu0 0.0
  %306 = vmatpush.xpose.msra.mxu0 0.0
  %307 = vmatpush.xpose.msra.mxu0 0.0
  %308 = vmatpush.xpose.msra.mxu0 %v291
  %309 = vmatmul.f32.gmra.mxu0 %v285
  %v310 = vpop.f32.mrf.mxu0
  %v311 = vadd.f32 0.0, %v310
  %312 = vmatmul.f32.gmra.mxu0 %v288
  %v313 = vpop.f32.mrf.mxu0
  %v314 = vadd.f32 0.0, %v313
  %315 = vdwg.mxu0
  %v316 = vmul.f32 %v311, 2.828427
  %v317 = vmul.f32 %v314, 2.828427
  %v318 = vsel %vm140, %v316, -inf
  %319 = vmax.xlane.f32.xlu0 %v318
  %v320 = vpop.xlane.xlu0 %319
  %v321 = vsel %vm140, %v317, -inf
  %322 = vmax.xlane.f32.xlu0 %v321
  %v323 = vpop.xlane.xlu0 %322
  %v324 = vsub.f32 %v316, %v320
  %v325 = vsub.f32 %v317, %v323
  %v326 = vmul.f32 %v324, 1.442695
  %v327 = vpow.pop %v326
  %v328 = vmul.f32 %v325, 1.442695
  %v329 = vpow.pop %v328
  %v330 = vsel %vm140, %v327, 0.0
  %331 = vadd.xlane.f32.xlu0 %v330
  %v332 = vpop.xlane.xlu0 %331
  %v333 = vsel %vm140, %v329, 0.0
  %334 = vadd.xlane.f32.xlu0 %v333
  %v335 = vpop.xlane.xlu0 %334
  %v336 = vrcp.pop %v332
  %v337 = vmul.f32 %v332, %v336
  %v338 = vsub.f32 1.0, %v337
  %v339 = vmul.f32 %v336, %v338
  %v340 = vadd.f32 %v336, %v339
  %vm341 = vweird.f32 %v332
  %vm342 = vweird.f32 %v336
  %vm343 = vmor %vm341, %vm342
  %v344 = vsel %vm343, %v336, %v340
  %v345 = vand.u32 2147483647, %v332
  %vm346 = vcmp.eq.f32.partialorder %v345, 8.507059e+37
  %v347 = vand.u32 %v332, 2147483648
  %v348 = vor.u32 1.1754944e-38, %v347
  %v349 = vsel %vm346, %v348, %v344
  %v350 = vmul.f32 %v327, %v349
  %v351 = vrcp.pop %v335
  %v352 = vmul.f32 %v335, %v351
  %v353 = vsub.f32 1.0, %v352
  %v354 = vmul.f32 %v351, %v353
  %v355 = vadd.f32 %v351, %v354
  %vm356 = vweird.f32 %v335
  %vm357 = vweird.f32 %v351
  %vm358 = vmor %vm356, %vm357
  %v359 = vsel %vm358, %v351, %v355
  %v360 = vand.u32 2147483647, %v335
  %vm361 = vcmp.eq.f32.partialorder %v360, 8.507059e+37
  %v362 = vand.u32 %v335, 2147483648
  %v363 = vor.u32 1.1754944e-38, %v362
  %v364 = vsel %vm361, %v363, %v359
  %v365 = vmul.f32 %v329, %v364
  %366 = vrot.lane.b32.xlu0 %v102, 112
  %v367 = vpop.permute.xlu0 %366
  %v370 = vsel %vm140, %v350, 0
  %v373 = vsel %vm140, %v365, 0
  %375 = vmatpush.msra.mxu0 0.0
  %376 = vmatpush.msra.mxu0 0.0
  %377 = vmatpush.msra.mxu0 0.0
  %378 = vmatpush.msra.mxu0 0.0
  %379 = vmatpush.msra.mxu0 0.0
  %380 = vmatpush.msra.mxu0 0.0
  %381 = vmatpush.msra.mxu0 0.0
  %382 = vmatpush.msra.mxu0 0.0
  %383 = vmatpush.msra.mxu0 0.0
  %384 = vmatpush.msra.mxu0 0.0
  %385 = vmatpush.msra.mxu0 0.0
  %386 = vmatpush.msra.mxu0 0.0
  %387 = vmatpush.msra.mxu0 0.0
  %388 = vmatpush.msra.mxu0 0.0
  %389 = vmatpush.msra.mxu0 0.0
  %390 = vmatpush.msra.mxu0 %v367
  %391 = vmatmul.f32.gmra.mxu0 %v370
  %v392 = vpop.f32.mrf.mxu0
  %v393 = vadd.f32 0.0, %v392
  %394 = vmatmul.f32.gmra.mxu0 %v373
  %v395 = vpop.f32.mrf.mxu0
  %v396 = vadd.f32 0.0, %v395
  %397 = vdwg.mxu0
  %398 = vxpose.xlu0.b32.start [1/16] %v393, 128
  %399 = vxpose.xlu0.b32.cont [2/16] %v396, 128
  %400 = vxpose.xlu0.b32.cont [3/16] 0.0, 128
  %401 = vxpose.xlu0.b32.cont [4/16] 0.0, 128
  %402 = vxpose.xlu0.b32.cont [5/16] 0.0, 128
  %403 = vxpose.xlu0.b32.cont [6/16] 0.0, 128
  %404 = vxpose.xlu0.b32.cont [7/16] 0.0, 128
  %405 = vxpose.xlu0.b32.cont [8/16] 0.0, 128
  %406 = vxpose.xlu0.b32.cont [9/16] 0.0, 128
  %407 = vxpose.xlu0.b32.cont [10/16] 0.0, 128
  %408 = vxpose.xlu0.b32.cont [11/16] 0.0, 128
  %409 = vxpose.xlu0.b32.cont [12/16] 0.0, 128
  %410 = vxpose.xlu0.b32.cont [13/16] 0.0, 128
  %411 = vxpose.xlu0.b32.cont [14/16] 0.0, 128
  %412 = vxpose.xlu0.b32.cont [15/16] 0.0, 128
  %413 = vxpose.xlu0.b32.end [16/16] 0.0, 128
  %v414 = vpop.trf.xlu0
  %v415 = vpop.trf.xlu0
  %v416 = vpop.trf.xlu0
  %v417 = vpop.trf.xlu0
  %v418 = vpop.trf.xlu0
  %v419 = vpop.trf.xlu0
  %v420 = vpop.trf.xlu0
  %v421 = vpop.trf.xlu0
  %v422 = vpop.trf.xlu0
  %v423 = vpop.trf.xlu0
  %v424 = vpop.trf.xlu0
  %v425 = vpop.trf.xlu0
  %v426 = vpop.trf.xlu0
  %v427 = vpop.trf.xlu0
  %v428 = vpop.trf.xlu0
  %v429 = vpop.trf.xlu0
  %v431 = vsel %vm29, %v414, 0
  %v434 = vsel %vm29, %v415, 0
  %436 = vmatpush.msra.mxu0 0.0
  %437 = vmatpush.msra.mxu0 0.0
  %438 = vmatpush.msra.mxu0 0.0
  %439 = vmatpush.msra.mxu0 0.0
  %440 = vmatpush.msra.mxu0 0.0
  %441 = vmatpush.msra.mxu0 0.0
  %442 = vmatpush.msra.mxu0 0.0
  %443 = vmatpush.msra.mxu0 0.0
  %444 = vmatpush.msra.mxu0 0.0
  %445 = vmatpush.msra.mxu0 0.0
  %446 = vmatpush.msra.mxu0 0.0
  %447 = vmatpush.msra.mxu0 0.0
  %448 = vmatpush.msra.mxu0 0.0
  %449 = vmatpush.msra.mxu0 0.0
  %450 = vmatpush.msra.mxu0 %v105
  %451 = vmatpush.msra.mxu0 %v104
  %452 = vmatmul.f32.gmra.mxu0 %v431
  %v453 = vpop.f32.mrf.mxu0
  %v454 = vadd.f32 0.0, %v453
  %455 = vmatmul.f32.gmra.mxu0 %v434
  %v456 = vpop.f32.mrf.mxu0
  %v457 = vadd.f32 0.0, %v456
  %458 = vdwg.mxu0
  %s459 = scalar_lea.vmem %s6, 16
  %460 = vst.msk [vmem:[%s459] sm:$0xff] %vm140, %v454
  %461 = vst.msk [vmem:[%s459 + $0x8] sm:$0xff] %vm140, %v457
  // Predicated region
  $region26: #{tpu_custom_call.1} parent=0 // pred_check
    _
  $region27: #{tpu_custom_call.1} parent=0 // pred_check_branch
    %463 = sbr.rel (0) target = $region29
  $region28: #{tpu_custom_call.1} parent=0 // pred_region
    _
  $region29: #{tpu_custom_call.1} parent=0 // pred_fallthru
    _
  // Predicated region
  $region30: #{tpu_custom_call.1} parent=0 // pred_check
    _
  $region31: #{tpu_custom_call.1} parent=0 // pred_check_branch
    %465 = sbr.rel (0) target = $region33
  $region32: #{tpu_custom_call.1} parent=0 // pred_region
    _
  $region33: #{tpu_custom_call.1} parent=0 // pred_fallthru
    _

</llo_original>
